<compile_context>
chip_gen: v7x
topology: tpu7x:2x2x1
jax: 0.10.0
libtpu: 0.0.40
codegen_flags: <defaults>
</compile_context>

<pallas_src>
import jax
import jax.numpy as jnp
from jax.experimental import pallas as pl
from jax.experimental.pallas import tpu as pltpu


def _round_up(n, m):
    return ((n + m - 1) // m) * m


# ---------------------------------------------------------------------------
# Standalone Swish (SiLU): x * sigmoid(x)
# ---------------------------------------------------------------------------
def _swish_kernel(x_ref, o_ref):
    x = x_ref[...]
    if x.dtype == jnp.bfloat16:
        # bf16 VPU/EUP are native on v6e/v7x: skip the f32 upcast, halves
        # vreg pressure / VMEM footprint of the compute tile.
        sig = 0.5 * (jnp.tanh(0.5 * x) + 1.0)       # tanh -> EUP slot
        o_ref[...] = (x * sig).astype(o_ref.dtype)
    else:
        xf = x.astype(jnp.float32)
        sig = 0.5 * (jnp.tanh(0.5 * xf) + 1.0)      # tanh -> EUP slot
        o_ref[...] = (xf * sig).astype(o_ref.dtype)


def swish(x, *, row_tile=1024, lanes=512):
    """Swish/SiLU elementwise, any shape, lane-dense tiling."""
    orig_shape = x.shape
    orig_dtype = x.dtype
    n = x.size
    flat = x.reshape(-1)

    # Pick a tile ~2 MiB f32 (1024 x 512); shrink for tiny inputs so padding
    # stays bounded. rt stays a multiple of 8 (sublane constraint).
    rt = row_tile
    while rt > 8 and rt * lanes > 2 * n:
        rt //= 2
    tile_elems = rt * lanes

    n_pad = _round_up(n, tile_elems)
    if n_pad != n:
        flat = jnp.pad(flat, (0, n_pad - n))        # swish(0) == 0, sliced off
    rows = n_pad // lanes
    x2d = flat.reshape(rows, lanes)
    grid = (rows // rt,)

    itemsize = jnp.dtype(orig_dtype).itemsize
    out2d = pl.pallas_call(
        _swish_kernel,
        out_shape=jax.ShapeDtypeStruct((rows, lanes), orig_dtype),
        grid_spec=pltpu.PrefetchScalarGridSpec(
            num_scalar_prefetch=0,
            grid=grid,
            in_specs=[pl.BlockSpec((rt, lanes), lambda i: (i, 0))],
            out_specs=pl.BlockSpec((rt, lanes), lambda i: (i, 0)),
        ),
        compiler_params=pltpu.CompilerParams(
            dimension_semantics=("parallel",),
        ),
        cost_estimate=pl.CostEstimate(
            flops=4 * n_pad,
            transcendentals=n_pad,
            bytes_accessed=2 * n_pad * itemsize,
        ),
    )(x2d)
    return out2d.reshape(-1)[:n].reshape(orig_shape)


# ---------------------------------------------------------------------------
# Fused SwiGLU core: out = (swish(x @ W1) * (x @ W2)) @ W3
# (Swish is applied on the matmul accumulator -> no activation HBM round trip.)
# Weights are stored (in_features, out_features), i.e. already transposed
# relative to torch.nn.Linear.weight.
# ---------------------------------------------------------------------------
def _swiglu_kernel(x_ref, w1_ref, w2_ref, w3_ref, o_ref):
    x = x_ref[...]
    # Gate / up projections on the MXU, f32 accumulation.
    g = jnp.dot(x, w1_ref[...], preferred_element_type=jnp.float32)
    u = jnp.dot(x, w2_ref[...], preferred_element_type=jnp.float32)
    # Swish epilogue directly on the accumulator: tanh -> EUP, muls -> VPU,
    # both hidden under the MXU-bound loop.
    h = g * (0.5 * (jnp.tanh(0.5 * g) + 1.0)) * u
    # Down projection.
    o_ref[...] = jnp.dot(h.astype(x.dtype), w3_ref[...],
                         preferred_element_type=jnp.float32).astype(o_ref.dtype)


def swiglu(x, w1, w2, w3, *, row_tile=256):
    """Fused SwiGLU: (swish(x@w1) * (x@w2)) @ w3 over the last dim of x."""
    lead_shape = x.shape[:-1]
    E = x.shape[-1]
    M = 1
    for d in lead_shape:
        M *= d
    x2d = x.reshape(M, E)

    rt = min(row_tile, _round_up(M, 8))
    M_pad = _round_up(M, rt)
    if M_pad != M:
        x2d = jnp.pad(x2d, ((0, M_pad - M), (0, 0)))
    grid = (M_pad // rt,)

    itemsize = jnp.dtype(x.dtype).itemsize
    out2d = pl.pallas_call(
        _swiglu_kernel,
        out_shape=jax.ShapeDtypeStruct((M_pad, E), x.dtype),
        grid_spec=pltpu.PrefetchScalarGridSpec(
            num_scalar_prefetch=0,
            grid=grid,
            in_specs=[
                pl.BlockSpec((rt, E), lambda i: (i, 0)),   # activation tile
                pl.BlockSpec((E, E), lambda i: (0, 0)),    # W1 (resident)
                pl.BlockSpec((E, E), lambda i: (0, 0)),    # W2 (resident)
                pl.BlockSpec((E, E), lambda i: (0, 0)),    # W3 (resident)
            ],
            out_specs=pl.BlockSpec((rt, E), lambda i: (i, 0)),
        ),
        compiler_params=pltpu.CompilerParams(
            dimension_semantics=("parallel",),
        ),
        cost_estimate=pl.CostEstimate(
            flops=6 * M_pad * E * E + 6 * M_pad * E,
            transcendentals=M_pad * E,
            bytes_accessed=(2 * M_pad * E + 3 * E * E) * itemsize,
        ),
    )(x2d, w1, w2, w3)
    return out2d[:M].reshape(*lead_shape, E)


if __name__ == "__main__":
    key = jax.random.PRNGKey(0)
    k1, k2, k3, k4 = jax.random.split(key, 4)

    # Small shapes consistent with the module: (batch, block_size, emb_dims)
    B, S, E = 2, 8, 32
    x = jax.random.normal(k1, (B, S, E), dtype=jnp.float32)

    # --- standalone Swish (the original Swish.forward) ---
    out_swish = jax.block_until_ready(swish(x))
    ref_swish = x * jax.nn.sigmoid(x)
    assert out_swish.shape == x.shape and out_swish.dtype == x.dtype
    assert jnp.allclose(out_swish, ref_swish, atol=1e-5, rtol=1e-5)

    # --- fused SwiGLU core (swish folded into the FFN matmul epilogue) ---
    w1 = jax.random.normal(k2, (E, E), dtype=jnp.float32) * 0.1
    w2 = jax.random.normal(k3, (E, E), dtype=jnp.float32) * 0.1
    w3 = jax.random.normal(k4, (E, E), dtype=jnp.float32) * 0.1
    out_swiglu = jax.block_until_ready(swiglu(x, w1, w2, w3))

    x2 = x.reshape(-1, E)
    g = x2 @ w1
    ref_swiglu = (((g * jax.nn.sigmoid(g)) * (x2 @ w2)) @ w3).reshape(B, S, E)
    assert out_swiglu.shape == (B, S, E) and out_swiglu.dtype == x.dtype
    assert jnp.allclose(out_swiglu, ref_swiglu, atol=1e-2, rtol=1e-2)

    print("KERNEL_OK")
</pallas_src>

<mosaic_0001>
module attributes {stable_mosaic.version = 11 : i64} {
  func.func @_swish_kernel(%arg0: i32, %arg1: memref<8x512xf32, #tpu.memory_space<vmem>>, %arg2: memref<8x512xf32, #tpu.memory_space<vmem>>) attributes {dimension_semantics = [#tpu.dimension_semantics<parallel>], iteration_bounds = array<i64: 1>, scalar_prefetch = 0 : i64, scratch_operands = 0 : i64, tpu.core_type = #tpu.core_type<tc>, window_params = [{transform_indices = @transform_0, window_bounds = array<i64: 8, 512>}, {transform_indices = @transform_1, window_bounds = array<i64: 8, 512>}]} {
    %c0 = arith.constant 0 : index
    %c0_0 = arith.constant 0 : index
    %0 = vector.load %arg1[%c0, %c0_0] : memref<8x512xf32, #tpu.memory_space<vmem>>, vector<8x512xf32>
    %cst = arith.constant 5.000000e-01 : f32
    %1 = vector.broadcast %cst : f32 to vector<8x512xf32>
    %2 = arith.mulf %1, %0 : vector<8x512xf32>
    %3 = math.tanh %2 : vector<8x512xf32>
    %cst_1 = arith.constant 1.000000e+00 : f32
    %4 = vector.broadcast %cst_1 : f32 to vector<8x512xf32>
    %5 = arith.addf %3, %4 : vector<8x512xf32>
    %cst_2 = arith.constant 5.000000e-01 : f32
    %6 = vector.broadcast %cst_2 : f32 to vector<8x512xf32>
    %7 = arith.mulf %6, %5 : vector<8x512xf32>
    %8 = arith.mulf %0, %7 : vector<8x512xf32>
    %c0_3 = arith.constant 0 : index
    %c0_4 = arith.constant 0 : index
    %9 = vector.load %arg2[%c0_3, %c0_4] : memref<8x512xf32, #tpu.memory_space<vmem>>, vector<8x512xf32>
    tpu.vector_store %arg2[%c0_3, %c0_4], %8 {strides = array<i32>} : memref<8x512xf32, #tpu.memory_space<vmem>>, vector<8x512xf32>,
    return
  }
  func.func @transform_0(%arg0: i32) -> (i32, i32) {
    %c0_i32 = arith.constant 0 : i32
    %c0_i32_0 = arith.constant 0 : i32
    return %arg0, %c0_i32 : i32, i32
  }
  func.func @transform_1(%arg0: i32) -> (i32, i32) {
    %c0_i32 = arith.constant 0 : i32
    %c0_i32_0 = arith.constant 0 : i32
    return %arg0, %c0_i32 : i32, i32
  }
}

</mosaic_0001>

<llo_original>
// kernel: tpu_custom_call.1
$region0: #{tpu_custom_call.1}
  #allocation0 [shape = 'u32[]', space=smem, size = 0x4, offset = 0x4, fixed_abs, tag = 'smem constant byte address 0x4 - core index']
  #allocation1 [shape = 'u32[144,128]{1,0:T(1,128)}', space=vmem, size = 0x12000, scoped, tag = 'internal scratch']
  %s0 = inlined_call_operand.hbm [shape: f32[8,512], index: 0, kind: input, shape index: {}]
  %s1 = inlined_call_operand.hbm [shape: f32[8,512], index: 1, kind: output, shape index: {}]
  %s2 = sld [smem:[#allocation0]]
  $region18: #{tpu_custom_call.1} parent=0
    _
  %s4 = ssub.s32 1, %s2
  %s5 = scalar_select 0, %s4, %s2
  $region1: #{tpu_custom_call.1} parent=0
    #allocation2 [shape = 'u8[16384]{0}', space=vmem, size = 0x4000, scoped, tag = 'input window, operand 0, single buffered']
    #allocation3 [shape = 's32[1]{0}', space=sflag, size = 0x4, scoped, tag = 'scoped memory for tpu_custom_call.1']
    #allocation4 [shape = 's32[1]{0}', space=sflag, size = 0x4, scoped, tag = 'scoped memory for tpu_custom_call.1']
    #allocation5 [shape = 'u8[16384]{0}', space=vmem, size = 0x4000, scoped, tag = 'output window, operand 0, single buffered']
    %6 = vsyncpa [#allocation3], 0
    %7 = vsyncpa [#allocation4], 0
    // Predicated region
    $region2: #{tpu_custom_call.1} parent=1 // pred_check
      _
    $region3: #{tpu_custom_call.1} parent=1 // pred_check_branch
      %9 = sbr.rel (0) target = $region5
    $region4: #{tpu_custom_call.1} parent=1 // pred_region
      %s11 = ssub.s32 512, 512
      %12 = vsyncadd [#allocation3], %s11
      %s14 = sshll.u32 [#allocation2], 4
      %s15 = int_to_ptr.vmem [resolvable:$true] %s14
      %17 = dma.hbm_to_vmem [thread:$0]  %s0, 512, %s15, [#allocation3]
    $region5: #{tpu_custom_call.1} parent=1 // pred_fallthru
      _
    // Predicated region
    $region6: #{tpu_custom_call.1} parent=1 // pred_check
      _
    $region7: #{tpu_custom_call.1} parent=1 // pred_check_branch
      %19 = sbr.rel (0) target = $region9
    $region8: #{tpu_custom_call.1} parent=1 // pred_region
      %20 = dma.done [#allocation3], 512
    $region9: #{tpu_custom_call.1} parent=1 // pred_fallthru
      _
    %v21 = vld [vmem:[#allocation2] sm:$0xff]
    %v22 = vld [vmem:[#allocation2 + $0x8] sm:$0xff]
    %v23 = vld [vmem:[#allocation2 + $0x10] sm:$0xff]
    %v24 = vld [vmem:[#allocation2 + $0x18] sm:$0xff]
    %v25 = vmul.f32 %v21, 0.5
    %v26 = vmul.f32 %v22, 0.5
    %v27 = vmul.f32 %v23, 0.5
    %v28 = vmul.f32 %v24, 0.5
    %v29 = vtanh.pop %v25
    %v30 = vtanh.pop %v26
    %v31 = vtanh.pop %v27
    %v32 = vtanh.pop %v28
    %v33 = vadd.f32 %v29, 1.0
    %v34 = vadd.f32 %v30, 1.0
    %v35 = vadd.f32 %v31, 1.0
    %v36 = vadd.f32 %v32, 1.0
    %v37 = vmul.f32 %v33, 0.5
    %v38 = vmul.f32 %v34, 0.5
    %v39 = vmul.f32 %v35, 0.5
    %v40 = vmul.f32 %v36, 0.5
    %v41 = vmul.f32 %v21, %v37
    %v42 = vmul.f32 %v22, %v38
    %v43 = vmul.f32 %v23, %v39
    %v44 = vmul.f32 %v24, %v40
    %45 = vst [vmem:[#allocation5] sm:$0xff] %v41
    %46 = vst [vmem:[#allocation5 + $0x8] sm:$0xff] %v42
    %47 = vst [vmem:[#allocation5 + $0x10] sm:$0xff] %v43
    %48 = vst [vmem:[#allocation5 + $0x18] sm:$0xff] %v44
    // Predicated region
    $region10: #{tpu_custom_call.1} parent=1 // pred_check
      _
    $region11: #{tpu_custom_call.1} parent=1 // pred_check_branch
      %50 = sbr.rel (0) target = $region13
    $region12: #{tpu_custom_call.1} parent=1 // pred_region
      %s52 = ssub.s32 512, 512
      %53 = vsyncadd [#allocation4], %s52
      %s55 = sshll.u32 [#allocation5], 4
      %s56 = int_to_ptr.vmem [resolvable:$true] %s55
      %58 = dma.vmem_to_hbm [thread:$0]  %s56, 512, %s1, [#allocation4]
    $region13: #{tpu_custom_call.1} parent=1 // pred_fallthru
      _
    // Predicated region
    $region14: #{tpu_custom_call.1} parent=1 // pred_check
      _
    $region15: #{tpu_custom_call.1} parent=1 // pred_check_branch
      %60 = sbr.rel (0) target = $region17
    $region16: #{tpu_custom_call.1} parent=1 // pred_region
      %61 = dma.done [#allocation4], 512
    $region17: #{tpu_custom_call.1} parent=1 // pred_fallthru
      _
    %62 = vsyncpa [#allocation3], 1
    %63 = vsyncpa [#allocation4], 1

</llo_original>
